<compile_context>
chip_gen: v7x
topology: tpu7x:2x2x1
jax: 0.10.0
libtpu: 0.0.40
codegen_flags: <defaults>
</compile_context>

<pallas_src>
import functools

import jax
import jax.numpy as jnp
from jax.experimental import pallas as pl
from jax.experimental.pallas import tpu as pltpu


# ----------------------------------------------------------------------------
# Fused Pallas kernel (one batch sample per grid step)
# ----------------------------------------------------------------------------
def fused_regressor_kernel(*refs, n_conv):
    """Conv1D stack -> ReLU -> flatten -> dense, fully fused, per sample.

    refs layout (inputs, outputs, scratch):
      [0]                 x_ref  (1, C_in, L)         one sample, NCL layout
      [1 .. 2*n_conv]     per conv layer: w_i (k_i, C_out_i, C_in_i),
                                          b_i (C_out_i, 1)
      [1 + 2*n_conv]      wd_ref (C_last, L_last)     dense weight (reshaped)
      [2 + 2*n_conv]      bd_ref (1, 1)               dense bias
      [3 + 2*n_conv]      o_ref  (1, 1, 1)            output block
      [4 + 2*n_conv ..]   h_i    (C_out_i, L_out_i)   VMEM scratch activations
    """
    x_ref = refs[0]
    conv_refs = refs[1:1 + 2 * n_conv]
    wd_ref = refs[1 + 2 * n_conv]
    bd_ref = refs[2 + 2 * n_conv]
    o_ref = refs[3 + 2 * n_conv]
    h_refs = refs[4 + 2 * n_conv:]          # n_conv - 1 scratch buffers

    acc = None
    for i in range(n_conv):
        w_ref = conv_refs[2 * i]            # (k, C_out, C_in)
        b_ref = conv_refs[2 * i + 1]        # (C_out, 1)
        k = w_ref.shape[0]

        # Ref-level shifted windows (only the needed (C_in, L_out) slab loads).
        if i == 0:
            L_out = x_ref.shape[2] - k + 1
            wins = [x_ref[0, :, j:j + L_out] for j in range(k)]
        else:
            h_in = h_refs[i - 1]
            L_out = h_in.shape[1] - k + 1
            wins = [h_in[:, j:j + L_out] for j in range(k)]

        # Valid, stride-1 conv = k small 2-D MXU matmuls; tap 0 initializes the
        # accumulator (no zero-fill), bias added once, all accumulation in f32.
        acc = jnp.dot(w_ref[0], wins[0], preferred_element_type=jnp.float32)
        for j in range(1, k):
            acc = acc + jnp.dot(w_ref[j], wins[j],
                                preferred_element_type=jnp.float32)
        acc = acc + b_ref[...]              # (C_out, 1) broadcasts over lanes

        if i < n_conv - 1:
            acc = jnp.maximum(acc, 0.0)     # ReLU; dropout == identity (eval)
            h_refs[i][...] = acc.astype(h_refs[i].dtype)

    # Dense head: VPU broadcast-multiply + lane reduce + sublane reduce.
    # acc is (C_last, L_last); flatten(1) order == row-major of (C_last, L_last),
    # so wd_ref (reshaped host-side) lines up element-for-element.
    prod = acc * wd_ref[...]                                    # (C_last, L_last)
    tot = jnp.sum(jnp.sum(prod, axis=1, keepdims=True),         # lane reduce
                  axis=0, keepdims=True)                        # sublane reduce
    o_ref[0] = (tot + bd_ref[...]).astype(o_ref.dtype)          # (1, 1) block


# ----------------------------------------------------------------------------
# Wrapper: one-time host-side parameter reshuffles + single pallas_call
# ----------------------------------------------------------------------------
def conv1d_regressor_forward(x_ncl, conv_params, w_dense, b_dense):
    """Full forward pass.

    x_ncl:       (N, feature_dim, L)   PyTorch NCL layout
    conv_params: list of (w, b), w: (k, C_in, C_out), b: (1, C_out)
    w_dense:     (dense_nodes, 1),     dense_nodes == C_last * L_last
    b_dense:     (1, 1)
    """
    N, C_in, L = x_ncl.shape
    n_conv = len(conv_params)

    inputs = [x_ncl]
    in_specs = [pl.BlockSpec((1, C_in, L), lambda n: (n, 0, 0))]
    scratch_shapes = []

    L_cur, C_cur = L, C_in
    for idx, (w, b) in enumerate(conv_params):
        k, c_in, c_out = w.shape
        assert c_in == C_cur, "channel mismatch in conv stack"
        # One-time parameter reorders (weights only; activations never transposed).
        w_t = jnp.transpose(w, (0, 2, 1))           # (k, C_out, C_in)
        b_t = b.reshape(c_out, 1)                   # (C_out, 1)
        inputs += [w_t, b_t]
        in_specs += [pl.BlockSpec((k, c_out, c_in), lambda n: (0, 0, 0)),
                     pl.BlockSpec((c_out, 1), lambda n: (0, 0))]
        L_cur = L_cur - k + 1
        C_cur = c_out
        if idx < n_conv - 1:
            scratch_shapes.append(pltpu.VMEM((c_out, L_cur), jnp.float32))
    L_last, C_last = L_cur, C_cur

    # PyTorch flatten(1) of (N, C_last, L_last) is row-major over (C_last, L_last):
    # the dense weight only needs a reshape (no runtime permutation).
    wd = w_dense.reshape(C_last, L_last)
    bd = b_dense.reshape(1, 1)
    inputs += [wd, bd]
    in_specs += [pl.BlockSpec((C_last, L_last), lambda n: (0, 0)),
                 pl.BlockSpec((1, 1), lambda n: (0, 0))]

    out = pl.pallas_call(
        functools.partial(fused_regressor_kernel, n_conv=n_conv),
        out_shape=jax.ShapeDtypeStruct((N, 1, 1), x_ncl.dtype),
        grid_spec=pltpu.PrefetchScalarGridSpec(
            num_scalar_prefetch=0,
            grid=(N,),
            in_specs=in_specs,
            out_specs=pl.BlockSpec((1, 1, 1), lambda n: (n, 0, 0)),
            scratch_shapes=scratch_shapes,
        ),
        compiler_params=pltpu.CompilerParams(
            dimension_semantics=("parallel",),
        ),
    )(*inputs)
    return out.reshape(N, 1)


# ----------------------------------------------------------------------------
# Pure-JAX reference (same parameters), for correctness checking
# ----------------------------------------------------------------------------
def reference_forward(x_ncl, conv_params, w_dense, b_dense):
    h = x_ncl
    n_layers = len(conv_params)
    for idx, (w, b) in enumerate(conv_params):
        k = w.shape[0]
        L_out = h.shape[2] - k + 1
        out = jnp.zeros((h.shape[0], w.shape[2], L_out), jnp.float32)
        for j in range(k):
            out = out + jnp.einsum("ncl,cd->ndl", h[:, :, j:j + L_out], w[j])
        out = out + b.reshape(1, -1, 1)
        if idx < n_layers - 1:
            out = jnp.maximum(out, 0.0)
        h = out
    flat = h.reshape(h.shape[0], -1)
    return flat @ w_dense + b_dense


# ----------------------------------------------------------------------------
if __name__ == "__main__":
    # Module hyperparameters (small, consistent with the forward pass)
    N = 2                       # batch
    feature_dim = 8             # input channels
    L = 16                      # sequence length
    out_channels = [16, 8]
    kernel_size = [3, 3]
    # L after convs: 16 -> 14 -> 12, so dense_nodes = 8 * 12 = 96
    dense_nodes = out_channels[-1] * (L - sum(k - 1 for k in kernel_size))

    key = jax.random.PRNGKey(0)
    keys = jax.random.split(key, 2 * len(out_channels) + 3)

    # Deterministic synthetic parameters.
    # Conv weights stored as (k, C_in, C_out); PyTorch stores (C_out, C_in, k).
    conv_params = []
    in_c = feature_dim
    ki = 0
    for out_c, k in zip(out_channels, kernel_size):
        fan_in = in_c * k
        w = jax.random.normal(keys[ki], (k, in_c, out_c), jnp.float32) / jnp.sqrt(fan_in)
        b = jax.random.normal(keys[ki + 1], (1, out_c), jnp.float32) * 0.01
        conv_params.append((w, b))
        in_c = out_c
        ki += 2

    w_dense = jax.random.normal(keys[ki], (dense_nodes, 1), jnp.float32) / jnp.sqrt(dense_nodes)
    b_dense = jax.random.normal(keys[ki + 1], (1, 1), jnp.float32) * 0.01

    # Input in PyTorch NCL layout.
    x = jax.random.normal(keys[ki + 2], (N, feature_dim, L), jnp.float32)

    out = conv1d_regressor_forward(x, conv_params, w_dense, b_dense)
    out = jax.block_until_ready(out)

    ref = reference_forward(x, conv_params, w_dense, b_dense)
    assert out.shape == (N, 1), out.shape
    assert jnp.allclose(out, ref, atol=1e-4, rtol=1e-4), (out, ref)

    print("KERNEL_OK")
</pallas_src>

<mosaic_0001>
module attributes {stable_mosaic.version = 11 : i64} {
  func.func @fused_regressor_kernel(%arg0: i32, %arg1: memref<1x8x16xf32, #tpu.memory_space<vmem>>, %arg2: memref<3x16x8xf32, #tpu.memory_space<vmem>>, %arg3: memref<16x1xf32, #tpu.memory_space<vmem>>, %arg4: memref<3x8x16xf32, #tpu.memory_space<vmem>>, %arg5: memref<8x1xf32, #tpu.memory_space<vmem>>, %arg6: memref<8x12xf32, #tpu.memory_space<vmem>>, %arg7: memref<1x1xf32, #tpu.memory_space<vmem>>, %arg8: memref<1x1x1xf32, #tpu.memory_space<vmem>>, %arg9: memref<16x14xf32, #tpu.memory_space<vmem>>) attributes {dimension_semantics = [#tpu.dimension_semantics<parallel>], iteration_bounds = array<i64: 2>, scalar_prefetch = 0 : i64, scratch_operands = 1 : i64, tpu.core_type = #tpu.core_type<tc>, window_params = [{transform_indices = @transform_0, window_bounds = array<i64: 1, 8, 16>}, {pipeline_mode = #tpu.pipeline_mode<synchronous>, transform_indices = @transform_1, window_bounds = array<i64: 3, 16, 8>}, {pipeline_mode = #tpu.pipeline_mode<synchronous>, transform_indices = @transform_2, window_bounds = array<i64: 16, 1>}, {pipeline_mode = #tpu.pipeline_mode<synchronous>, transform_indices = @transform_3, window_bounds = array<i64: 3, 8, 16>}, {pipeline_mode = #tpu.pipeline_mode<synchronous>, transform_indices = @transform_4, window_bounds = array<i64: 8, 1>}, {pipeline_mode = #tpu.pipeline_mode<synchronous>, transform_indices = @transform_5, window_bounds = array<i64: 8, 12>}, {pipeline_mode = #tpu.pipeline_mode<synchronous>, transform_indices = @transform_6, window_bounds = array<i64: 1, 1>}, {transform_indices = @transform_7, window_bounds = array<i64: 1, 1, 1>}]} {
    %c0 = arith.constant 0 : index
    %c0_0 = arith.constant 0 : index
    %c0_1 = arith.constant 0 : index
    %0 = vector.load %arg1[%c0, %c0_0, %c0_1] : memref<1x8x16xf32, #tpu.memory_space<vmem>>, vector<1x8x14xf32>
    %1 = vector.shape_cast %0 : vector<1x8x14xf32> to vector<8x14xf32>
    %c0_2 = arith.constant 0 : index
    %c0_3 = arith.constant 0 : index
    %c1 = arith.constant 1 : index
    %2 = vector.load %arg1[%c0_2, %c0_3, %c1] : memref<1x8x16xf32, #tpu.memory_space<vmem>>, vector<1x8x14xf32>
    %3 = vector.shape_cast %2 : vector<1x8x14xf32> to vector<8x14xf32>
    %c0_4 = arith.constant 0 : index
    %c0_5 = arith.constant 0 : index
    %c2 = arith.constant 2 : index
    %4 = vector.load %arg1[%c0_4, %c0_5, %c2] : memref<1x8x16xf32, #tpu.memory_space<vmem>>, vector<1x8x14xf32>
    %5 = vector.shape_cast %4 : vector<1x8x14xf32> to vector<8x14xf32>
    %c0_6 = arith.constant 0 : index
    %c0_7 = arith.constant 0 : index
    %c0_8 = arith.constant 0 : index
    %6 = vector.load %arg2[%c0_6, %c0_7, %c0_8] : memref<3x16x8xf32, #tpu.memory_space<vmem>>, vector<1x16x8xf32>
    %7 = vector.shape_cast %6 : vector<1x16x8xf32> to vector<16x8xf32>
    %cst = arith.constant dense<0.000000e+00> : vector<16x14xf32>
    %8 = tpu.matmul %7, %1, %cst {dimension_numbers = #tpu.dot_dimension_numbers<[1], [0], [0], [1], [0, 0, 1, 1], [], []>} : vector<16x8xf32>, vector<8x14xf32>, vector<16x14xf32> -> vector<16x14xf32>
    %c1_9 = arith.constant 1 : index
    %c0_10 = arith.constant 0 : index
    %c0_11 = arith.constant 0 : index
    %9 = vector.load %arg2[%c1_9, %c0_10, %c0_11] : memref<3x16x8xf32, #tpu.memory_space<vmem>>, vector<1x16x8xf32>
    %10 = vector.shape_cast %9 : vector<1x16x8xf32> to vector<16x8xf32>
    %cst_12 = arith.constant dense<0.000000e+00> : vector<16x14xf32>
    %11 = tpu.matmul %10, %3, %cst_12 {dimension_numbers = #tpu.dot_dimension_numbers<[1], [0], [0], [1], [0, 0, 1, 1], [], []>} : vector<16x8xf32>, vector<8x14xf32>, vector<16x14xf32> -> vector<16x14xf32>
    %12 = arith.addf %8, %11 : vector<16x14xf32>
    %c2_13 = arith.constant 2 : index
    %c0_14 = arith.constant 0 : index
    %c0_15 = arith.constant 0 : index
    %13 = vector.load %arg2[%c2_13, %c0_14, %c0_15] : memref<3x16x8xf32, #tpu.memory_space<vmem>>, vector<1x16x8xf32>
    %14 = vector.shape_cast %13 : vector<1x16x8xf32> to vector<16x8xf32>
    %cst_16 = arith.constant dense<0.000000e+00> : vector<16x14xf32>
    %15 = tpu.matmul %14, %5, %cst_16 {dimension_numbers = #tpu.dot_dimension_numbers<[1], [0], [0], [1], [0, 0, 1, 1], [], []>} : vector<16x8xf32>, vector<8x14xf32>, vector<16x14xf32> -> vector<16x14xf32>
    %16 = arith.addf %12, %15 : vector<16x14xf32>
    %c0_17 = arith.constant 0 : index
    %c0_18 = arith.constant 0 : index
    %17 = vector.load %arg3[%c0_17, %c0_18] : memref<16x1xf32, #tpu.memory_space<vmem>>, vector<16x1xf32>
    %18 = vector.broadcast %17 : vector<16x1xf32> to vector<16x14xf32>
    %19 = arith.addf %16, %18 : vector<16x14xf32>
    %cst_19 = arith.constant 0.000000e+00 : f32
    %20 = vector.broadcast %cst_19 : f32 to vector<16x14xf32>
    %21 = arith.maximumf %19, %20 : vector<16x14xf32>
    %c0_20 = arith.constant 0 : index
    %c0_21 = arith.constant 0 : index
    %22 = vector.load %arg9[%c0_20, %c0_21] : memref<16x14xf32, #tpu.memory_space<vmem>>, vector<16x14xf32>
    tpu.vector_store %arg9[%c0_20, %c0_21], %21 {strides = array<i32>} : memref<16x14xf32, #tpu.memory_space<vmem>>, vector<16x14xf32>,
    %c0_22 = arith.constant 0 : index
    %c0_23 = arith.constant 0 : index
    %23 = vector.load %arg9[%c0_22, %c0_23] : memref<16x14xf32, #tpu.memory_space<vmem>>, vector<16x12xf32>
    %c0_24 = arith.constant 0 : index
    %c1_25 = arith.constant 1 : index
    %24 = vector.load %arg9[%c0_24, %c1_25] : memref<16x14xf32, #tpu.memory_space<vmem>>, vector<16x12xf32>
    %c0_26 = arith.constant 0 : index
    %c2_27 = arith.constant 2 : index
    %25 = vector.load %arg9[%c0_26, %c2_27] : memref<16x14xf32, #tpu.memory_space<vmem>>, vector<16x12xf32>
    %c0_28 = arith.constant 0 : index
    %c0_29 = arith.constant 0 : index
    %c0_30 = arith.constant 0 : index
    %26 = vector.load %arg4[%c0_28, %c0_29, %c0_30] : memref<3x8x16xf32, #tpu.memory_space<vmem>>, vector<1x8x16xf32>
    %27 = vector.shape_cast %26 : vector<1x8x16xf32> to vector<8x16xf32>
    %cst_31 = arith.constant dense<0.000000e+00> : vector<8x12xf32>
    %28 = tpu.matmul %27, %23, %cst_31 {dimension_numbers = #tpu.dot_dimension_numbers<[1], [0], [0], [1], [0, 0, 1, 1], [], []>} : vector<8x16xf32>, vector<16x12xf32>, vector<8x12xf32> -> vector<8x12xf32>
    %c1_32 = arith.constant 1 : index
    %c0_33 = arith.constant 0 : index
    %c0_34 = arith.constant 0 : index
    %29 = vector.load %arg4[%c1_32, %c0_33, %c0_34] : memref<3x8x16xf32, #tpu.memory_space<vmem>>, vector<1x8x16xf32>
    %30 = vector.shape_cast %29 : vector<1x8x16xf32> to vector<8x16xf32>
    %cst_35 = arith.constant dense<0.000000e+00> : vector<8x12xf32>
    %31 = tpu.matmul %30, %24, %cst_35 {dimension_numbers = #tpu.dot_dimension_numbers<[1], [0], [0], [1], [0, 0, 1, 1], [], []>} : vector<8x16xf32>, vector<16x12xf32>, vector<8x12xf32> -> vector<8x12xf32>
    %32 = arith.addf %28, %31 : vector<8x12xf32>
    %c2_36 = arith.constant 2 : index
    %c0_37 = arith.constant 0 : index
    %c0_38 = arith.constant 0 : index
    %33 = vector.load %arg4[%c2_36, %c0_37, %c0_38] : memref<3x8x16xf32, #tpu.memory_space<vmem>>, vector<1x8x16xf32>
    %34 = vector.shape_cast %33 : vector<1x8x16xf32> to vector<8x16xf32>
    %cst_39 = arith.constant dense<0.000000e+00> : vector<8x12xf32>
    %35 = tpu.matmul %34, %25, %cst_39 {dimension_numbers = #tpu.dot_dimension_numbers<[1], [0], [0], [1], [0, 0, 1, 1], [], []>} : vector<8x16xf32>, vector<16x12xf32>, vector<8x12xf32> -> vector<8x12xf32>
    %36 = arith.addf %32, %35 : vector<8x12xf32>
    %c0_40 = arith.constant 0 : index
    %c0_41 = arith.constant 0 : index
    %37 = vector.load %arg5[%c0_40, %c0_41] : memref<8x1xf32, #tpu.memory_space<vmem>>, vector<8x1xf32>
    %38 = vector.broadcast %37 : vector<8x1xf32> to vector<8x12xf32>
    %39 = arith.addf %36, %38 : vector<8x12xf32>
    %c0_42 = arith.constant 0 : index
    %c0_43 = arith.constant 0 : index
    %40 = vector.load %arg6[%c0_42, %c0_43] : memref<8x12xf32, #tpu.memory_space<vmem>>, vector<8x12xf32>
    %41 = arith.mulf %39, %40 : vector<8x12xf32>
    %cst_44 = arith.constant dense<0.000000e+00> : vector<8xf32>
    %42 = vector.multi_reduction <add>, %41, %cst_44 [1] : vector<8x12xf32> to vector<8xf32>
    %43 = vector.shape_cast %42 : vector<8xf32> to vector<8x1xf32>
    %cst_45 = arith.constant dense<0.000000e+00> : vector<1xf32>
    %44 = vector.multi_reduction <add>, %43, %cst_45 [0] : vector<8x1xf32> to vector<1xf32>
    %45 = vector.shape_cast %44 : vector<1xf32> to vector<1x1xf32>
    %c0_46 = arith.constant 0 : index
    %c0_47 = arith.constant 0 : index
    %46 = vector.load %arg7[%c0_46, %c0_47] : memref<1x1xf32, #tpu.memory_space<vmem>>, vector<1x1xf32>
    %47 = arith.addf %45, %46 : vector<1x1xf32>
    %c0_48 = arith.constant 0 : index
    %c0_49 = arith.constant 0 : index
    %c0_50 = arith.constant 0 : index
    %48 = vector.load %arg8[%c0_48, %c0_49, %c0_50] : memref<1x1x1xf32, #tpu.memory_space<vmem>>, vector<1x1x1xf32>
    %49 = vector.shape_cast %48 : vector<1x1x1xf32> to vector<1x1xf32>
    %50 = vector.shape_cast %47 : vector<1x1xf32> to vector<1x1x1xf32>
    tpu.vector_store %arg8[%c0_48, %c0_49, %c0_50], %50 {strides = array<i32>} : memref<1x1x1xf32, #tpu.memory_space<vmem>>, vector<1x1x1xf32>,
    return
  }
  func.func @transform_0(%arg0: i32) -> (i32, i32, i32) {
    %c0_i32 = arith.constant 0 : i32
    %c0_i32_0 = arith.constant 0 : i32
    %c0_i32_1 = arith.constant 0 : i32
    return %arg0, %c0_i32, %c0_i32_0 : i32, i32, i32
  }
  func.func @transform_1(%arg0: i32) -> (i32, i32, i32) {
    %c0_i32 = arith.constant 0 : i32
    %c0_i32_0 = arith.constant 0 : i32
    %c0_i32_1 = arith.constant 0 : i32
    %c0_i32_2 = arith.constant 0 : i32
    return %c0_i32, %c0_i32_0, %c0_i32_1 : i32, i32, i32
  }
  func.func @transform_2(%arg0: i32) -> (i32, i32) {
    %c0_i32 = arith.constant 0 : i32
    %c0_i32_0 = arith.constant 0 : i32
    %c0_i32_1 = arith.constant 0 : i32
    return %c0_i32, %c0_i32_0 : i32, i32
  }
  func.func @transform_3(%arg0: i32) -> (i32, i32, i32) {
    %c0_i32 = arith.constant 0 : i32
    %c0_i32_0 = arith.constant 0 : i32
    %c0_i32_1 = arith.constant 0 : i32
    %c0_i32_2 = arith.constant 0 : i32
    return %c0_i32, %c0_i32_0, %c0_i32_1 : i32, i32, i32
  }
  func.func @transform_4(%arg0: i32) -> (i32, i32) {
    %c0_i32 = arith.constant 0 : i32
    %c0_i32_0 = arith.constant 0 : i32
    %c0_i32_1 = arith.constant 0 : i32
    return %c0_i32, %c0_i32_0 : i32, i32
  }
  func.func @transform_5(%arg0: i32) -> (i32, i32) {
    %c0_i32 = arith.constant 0 : i32
    %c0_i32_0 = arith.constant 0 : i32
    %c0_i32_1 = arith.constant 0 : i32
    return %c0_i32, %c0_i32_0 : i32, i32
  }
  func.func @transform_6(%arg0: i32) -> (i32, i32) {
    %c0_i32 = arith.constant 0 : i32
    %c0_i32_0 = arith.constant 0 : i32
    %c0_i32_1 = arith.constant 0 : i32
    return %c0_i32, %c0_i32_0 : i32, i32
  }
  func.func @transform_7(%arg0: i32) -> (i32, i32, i32) {
    %c0_i32 = arith.constant 0 : i32
    %c0_i32_0 = arith.constant 0 : i32
    %c0_i32_1 = arith.constant 0 : i32
    return %arg0, %c0_i32, %c0_i32_0 : i32, i32, i32
  }
}

</mosaic_0001>

<llo_original>
// kernel: tpu_custom_call.1
$region0: #{tpu_custom_call.1}
  #allocation0 [shape = 'u32[]', space=smem, size = 0x4, offset = 0x4, fixed_abs, tag = 'smem constant byte address 0x4 - core index']
  #allocation1 [shape = 'u32[144,128]{1,0:T(1,128)}', space=vmem, size = 0x12000, scoped, tag = 'internal scratch']
  #allocation2 [shape = 'f32[16,14]{1,0:T(8,128)}', space=vmem, size = 0x2000, scoped, tag = 'scratch operand']
  #allocation3 [shape = 'f32[1,1]{1,0:T(1,128)S(1)}', space=vmem, size = 0x200, scoped, tag = 'scoped memory for tpu_custom_call.1']
  %s0 = inlined_call_operand.vmem [shape: f32[2,8,16], index: 0, kind: input, shape index: {}]
  %s1 = inlined_call_operand.vmem [shape: f32[3,16,8], index: 1, kind: input, shape index: {}]
  %s2 = inlined_call_operand.vmem [shape: f32[16,1], index: 2, kind: input, shape index: {}]
  %s3 = inlined_call_operand.vmem [shape: f32[3,8,16], index: 3, kind: input, shape index: {}]
  %s4 = inlined_call_operand.vmem [shape: f32[8,1], index: 4, kind: input, shape index: {}]
  %s5 = inlined_call_operand.vmem [shape: f32[8,12], index: 5, kind: input, shape index: {}]
  %s6 = inlined_call_operand.<no memory space> [shape: f32[1,1], index: 6, kind: input, shape index: {}]
  %s7 = inlined_call_operand.vmem [shape: f32[2,1,1], index: 7, kind: output, shape index: {}]
  %s8 = sld [smem:[#allocation0]]
  $region61: #{tpu_custom_call.1} parent=0
    _
  %s10 = ssub.s32 1, %s8
  %s11 = scalar_select 0, %s10, %s8
  %v12 = vstv %s6
  %13 = vst [vmem:[#allocation3] sm:$0x1] %v12
  loop: start=0, step=1, limit=4
  $region2: #{tpu_custom_call.1} parent=0 // loop_pre_header
    _
  $region3: #{tpu_custom_call.1} parent=0 // loop_header
    %s15 = sphi 0, %s19
    %p16 = scmp.ge.s32.totalorder %s15, 4
    %s25 = sphi 0, %s27
    %s28 = sphi 0, %s25
    %s29 = sphi 0, %s28
    %s45 = sphi 0, %s29
    %s49 = sphi 0, %s49
    %s51 = sphi 0, %s49
    %s52 = sphi 0, %s51
    %s66 = sphi 0, %s52
    %s70 = sphi 0, %s70
    %s72 = sphi 0, %s70
    %s73 = sphi 0, %s72
    %s87 = sphi 0, %s73
    %s91 = sphi 0, %s91
    %s93 = sphi 0, %s91
    %s94 = sphi 0, %s93
    %s108 = sphi 0, %s94
    %s112 = sphi 0, %s112
    %s114 = sphi 0, %s112
    %s115 = sphi 0, %s114
    %s129 = sphi 0, %s115
    %s133 = sphi 0, %s133
    %s135 = sphi 0, %s133
    %s136 = sphi 0, %s135
    %s150 = sphi 0, %s136
    %s154 = sphi 0, %s154
    %s156 = sphi 0, %s154
    %s157 = sphi 0, %s156
    %s171 = sphi 0, %s157
    %s177 = sphi 0, %s179
    %s180 = sphi 0, %s177
    %s181 = sphi 0, %s180
    %s197 = sphi 0, %s181
  $region4: #{tpu_custom_call.1} parent=0 // loop_header_branch
    %18 = sbr.rel (%p16) target = $region8
  $region5: #{tpu_custom_call.1} parent=0 // loop_body
    %s20 = ssub.s32 %s15, 1
    %s21 = ssub.s32 %s15, 2
    %s22 = sadd.s32 %s15, 1
    %s23 = ssub.s32 %s15, %s22
    %p24 = scmp.eq.s32.totalorder %s23, 0
    %s26 = sadd.s32 %s25, 1
    %s27 = scalar_select %p24, %s25, %s26
    %p30 = pneg %p24
    %p31 = scmp.eq.s32.totalorder %s15, 1
    %p32 = por %p30, %p31
    %p33 = scmp.ne.s32.totalorder %s25, %s28
    %p34 = scmp.eq.s32.totalorder %s15, 0
    %p35 = por %p33, %p34
    %p36 = scmp.ne.s32.totalorder %s25, %s28
    %p37 = scmp.eq.s32.totalorder %s20, 1
    %p38 = por %p36, %p37
    %p39 = scmp.ne.s32.totalorder %s28, %s29
    %p40 = scmp.eq.s32.totalorder %s20, 0
    %p41 = por %p39, %p40
    %p42 = scmp.ne.s32.totalorder %s28, %s29
    %p43 = scmp.eq.s32.totalorder %s21, 1
    %p44 = por %p42, %p43
    %p46 = scmp.ne.s32.totalorder %s29, %s45
    %p47 = scmp.eq.s32.totalorder %s21, 0
    %p48 = por %p46, %p47
    %s50 = sadd.s32 %s49, 1
    %p53 = scmp.eq.s32.totalorder %s15, 1
    %p54 = scmp.ne.s32.totalorder %s49, %s51
    %p55 = scmp.eq.s32.totalorder %s15, 0
    %p56 = por %p54, %p55
    %p57 = scmp.ne.s32.totalorder %s49, %s51
    %p58 = scmp.eq.s32.totalorder %s20, 1
    %p59 = por %p57, %p58
    %p60 = scmp.ne.s32.totalorder %s51, %s52
    %p61 = scmp.eq.s32.totalorder %s20, 0
    %p62 = por %p60, %p61
    %p63 = scmp.ne.s32.totalorder %s51, %s52
    %p64 = scmp.eq.s32.totalorder %s21, 1
    %p65 = por %p63, %p64
    %p67 = scmp.ne.s32.totalorder %s52, %s66
    %p68 = scmp.eq.s32.totalorder %s21, 0
    %p69 = por %p67, %p68
    %s71 = sadd.s32 %s70, 1
    %p74 = scmp.eq.s32.totalorder %s15, 1
    %p75 = scmp.ne.s32.totalorder %s70, %s72
    %p76 = scmp.eq.s32.totalorder %s15, 0
    %p77 = por %p75, %p76
    %p78 = scmp.ne.s32.totalorder %s70, %s72
    %p79 = scmp.eq.s32.totalorder %s20, 1
    %p80 = por %p78, %p79
    %p81 = scmp.ne.s32.totalorder %s72, %s73
    %p82 = scmp.eq.s32.totalorder %s20, 0
    %p83 = por %p81, %p82
    %p84 = scmp.ne.s32.totalorder %s72, %s73
    %p85 = scmp.eq.s32.totalorder %s21, 1
    %p86 = por %p84, %p85
    %p88 = scmp.ne.s32.totalorder %s73, %s87
    %p89 = scmp.eq.s32.totalorder %s21, 0
    %p90 = por %p88, %p89
    %s92 = sadd.s32 %s91, 1
    %p95 = scmp.eq.s32.totalorder %s15, 1
    %p96 = scmp.ne.s32.totalorder %s91, %s93
    %p97 = scmp.eq.s32.totalorder %s15, 0
    %p98 = por %p96, %p97
    %p99 = scmp.ne.s32.totalorder %s91, %s93
    %p100 = scmp.eq.s32.totalorder %s20, 1
    %p101 = por %p99, %p100
    %p102 = scmp.ne.s32.totalorder %s93, %s94
    %p103 = scmp.eq.s32.totalorder %s20, 0
    %p104 = por %p102, %p103
    %p105 = scmp.ne.s32.totalorder %s93, %s94
    %p106 = scmp.eq.s32.totalorder %s21, 1
    %p107 = por %p105, %p106
    %p109 = scmp.ne.s32.totalorder %s94, %s108
    %p110 = scmp.eq.s32.totalorder %s21, 0
    %p111 = por %p109, %p110
    %s113 = sadd.s32 %s112, 1
    %p116 = scmp.eq.s32.totalorder %s15, 1
    %p117 = scmp.ne.s32.totalorder %s112, %s114
    %p118 = scmp.eq.s32.totalorder %s15, 0
    %p119 = por %p117, %p118
    %p120 = scmp.ne.s32.totalorder %s112, %s114
    %p121 = scmp.eq.s32.totalorder %s20, 1
    %p122 = por %p120, %p121
    %p123 = scmp.ne.s32.totalorder %s114, %s115
    %p124 = scmp.eq.s32.totalorder %s20, 0
    %p125 = por %p123, %p124
    %p126 = scmp.ne.s32.totalorder %s114, %s115
    %p127 = scmp.eq.s32.totalorder %s21, 1
    %p128 = por %p126, %p127
    %p130 = scmp.ne.s32.totalorder %s115, %s129
    %p131 = scmp.eq.s32.totalorder %s21, 0
    %p132 = por %p130, %p131
    %s134 = sadd.s32 %s133, 1
    %p137 = scmp.eq.s32.totalorder %s15, 1
    %p138 = scmp.ne.s32.totalorder %s133, %s135
    %p139 = scmp.eq.s32.totalorder %s15, 0
    %p140 = por %p138, %p139
    %p141 = scmp.ne.s32.totalorder %s133, %s135
    %p142 = scmp.eq.s32.totalorder %s20, 1
    %p143 = por %p141, %p142
    %p144 = scmp.ne.s32.totalorder %s135, %s136
    %p145 = scmp.eq.s32.totalorder %s20, 0
    %p146 = por %p144, %p145
    %p147 = scmp.ne.s32.totalorder %s135, %s136
    %p148 = scmp.eq.s32.totalorder %s21, 1
    %p149 = por %p147, %p148
    %p151 = scmp.ne.s32.totalorder %s136, %s150
    %p152 = scmp.eq.s32.totalorder %s21, 0
    %p153 = por %p151, %p152
    %s155 = sadd.s32 %s154, 1
    %p158 = scmp.eq.s32.totalorder %s15, 1
    %p159 = scmp.ne.s32.totalorder %s154, %s156
    %p160 = scmp.eq.s32.totalorder %s15, 0
    %p161 = por %p159, %p160
    %p162 = scmp.ne.s32.totalorder %s154, %s156
    %p163 = scmp.eq.s32.totalorder %s20, 1
    %p164 = por %p162, %p163
    %p165 = scmp.ne.s32.totalorder %s156, %s157
    %p166 = scmp.eq.s32.totalorder %s20, 0
    %p167 = por %p165, %p166
    %p168 = scmp.ne.s32.totalorder %s156, %s157
    %p169 = scmp.eq.s32.totalorder %s21, 1
    %p170 = por %p168, %p169
    %p172 = scmp.ne.s32.totalorder %s157, %s171
    %p173 = scmp.eq.s32.totalorder %s21, 0
    %p174 = por %p172, %p173
    %s175 = ssub.s32 %s15, %s22
    %p176 = scmp.eq.s32.totalorder %s175, 0
    %s178 = sadd.s32 %s177, 1
    %s179 = scalar_select %p176, %s177, %s178
    %p182 = pneg %p176
    %p183 = scmp.eq.s32.totalorder %s15, 1
    %p184 = por %p182, %p183
    %p185 = scmp.ne.s32.totalorder %s177, %s180
    %p186 = scmp.eq.s32.totalorder %s15, 0
    %p187 = por %p185, %p186
    %p188 = scmp.ne.s32.totalorder %s177, %s180
    %p189 = scmp.eq.s32.totalorder %s20, 1
    %p190 = por %p188, %p189
    %p191 = scmp.ne.s32.totalorder %s180, %s181
    %p192 = scmp.eq.s32.totalorder %s20, 0
    %p193 = por %p191, %p192
    %p194 = scmp.ne.s32.totalorder %s180, %s181
    %p195 = scmp.eq.s32.totalorder %s21, 1
    %p196 = por %p194, %p195
    %p198 = scmp.ne.s32.totalorder %s181, %s197
    %p199 = scmp.eq.s32.totalorder %s21, 0
    %p200 = por %p198, %p199
    %p201 = scmp.le.s32.totalorder 1, %s15
    %p202 = scmp.lt.s32.totalorder %s15, 3
    %p203 = pnand %p201, %p202
    %p204 = pneg %p203
    // Predicated region
    $region9: #{tpu_custom_call.1} parent=5 // pred_check
      _
    $region10: #{tpu_custom_call.1} parent=5 // pred_check_branch
      %206 = sbr.rel (%p203) target = $region12
    $region11: #{tpu_custom_call.1} parent=5 // pred_region
      %s207 = ssub.s32 %s15, 1
      // Predicated region
      $region13: #{tpu_custom_call.1} parent=11 // pred_check
        %p208 = pneg %p62
      $region14: #{tpu_custom_call.1} parent=11 // pred_check_branch
        %210 = sbr.rel (%p208) target = $region16
      $region15: #{tpu_custom_call.1} parent=11 // pred_region
        _
      $region16: #{tpu_custom_call.1} parent=11 // pred_fallthru
        _
      // Predicated region
      $region17: #{tpu_custom_call.1} parent=11 // pred_check
        %p211 = pneg %p83
      $region18: #{tpu_custom_call.1} parent=11 // pred_check_branch
        %213 = sbr.rel (%p211) target = $region20
      $region19: #{tpu_custom_call.1} parent=11 // pred_region
        _
      $region20: #{tpu_custom_call.1} parent=11 // pred_fallthru
        _
      // Predicated region
      $region21: #{tpu_custom_call.1} parent=11 // pred_check
        %p214 = pneg %p104
      $region22: #{tpu_custom_call.1} parent=11 // pred_check_branch
        %216 = sbr.rel (%p214) target = $region24
      $region23: #{tpu_custom_call.1} parent=11 // pred_region
        _
      $region24: #{tpu_custom_call.1} parent=11 // pred_fallthru
        _
      // Predicated region
      $region25: #{tpu_custom_call.1} parent=11 // pred_check
        %p217 = pneg %p125
      $region26: #{tpu_custom_call.1} parent=11 // pred_check_branch
        %219 = sbr.rel (%p217) target = $region28
      $region27: #{tpu_custom_call.1} parent=11 // pred_region
        _
      $region28: #{tpu_custom_call.1} parent=11 // pred_fallthru
        _
      // Predicated region
      $region29: #{tpu_custom_call.1} parent=11 // pred_check
        %p220 = pneg %p146
      $region30: #{tpu_custom_call.1} parent=11 // pred_check_branch
        %222 = sbr.rel (%p220) target = $region32
      $region31: #{tpu_custom_call.1} parent=11 // pred_region
        _
      $region32: #{tpu_custom_call.1} parent=11 // pred_fallthru
        _
      // Predicated region
      $region33: #{tpu_custom_call.1} parent=11 // pred_check
        %p223 = pneg %p167
      $region34: #{tpu_custom_call.1} parent=11 // pred_check_branch
        %225 = sbr.rel (%p223) target = $region36
      $region35: #{tpu_custom_call.1} parent=11 // pred_region
        _
      $region36: #{tpu_custom_call.1} parent=11 // pred_fallthru
        _
    $region12: #{tpu_custom_call.1} parent=5 // pred_fallthru
      _
    %p226 = scmp.lt.s32.totalorder %s15, 2
    // Predicated region
    $region37: #{tpu_custom_call.1} parent=5 // pred_check
      %p227 = pneg %p226
    $region38: #{tpu_custom_call.1} parent=5 // pred_check_branch
      %229 = sbr.rel (%p227) target = $region40
    $region39: #{tpu_custom_call.1} parent=5 // pred_region
      // Predicated region
      $region41: #{tpu_custom_call.1} parent=39 // pred_check
        %p230 = pneg %p35
      $region42: #{tpu_custom_call.1} parent=39 // pred_check_branch
        %232 = sbr.rel (%p230) target = $region44
      $region43: #{tpu_custom_call.1} parent=39 // pred_region
        %p233 = scmp.lt.s32.totalorder %s15, 1
        %s234 = scalar_select %p233, %s15, 1
        %s235 = smul.addr %s234, 8
        %s236 = scalar_lea.vmem %s0, %s235
      $region44: #{tpu_custom_call.1} parent=39 // pred_fallthru
        _
    $region40: #{tpu_custom_call.1} parent=5 // pred_fallthru
      _
    %p237 = scmp.le.s32.totalorder 1, %s15
    %p238 = scmp.lt.s32.totalorder %s15, 3
    %p239 = pnand %p237, %p238
    %p240 = pneg %p239
    // Predicated region
    $region45: #{tpu_custom_call.1} parent=5 // pred_check
      _
    $region46: #{tpu_custom_call.1} parent=5 // pred_check_branch
      %242 = sbr.rel (%p239) target = $region48
    $region47: #{tpu_custom_call.1} parent=5 // pred_region
      %s243 = ssub.s32 %s15, 1
      %p244 = scmp.lt.s32.totalorder %s20, 1
      %s245 = scalar_select %p244, %s20, 1
      %s246 = smul.addr %s245, 8
      %s247 = scalar_lea.vmem %s0, %s246
      %p248 = pneg %p41
      %p249 = pneg %p38
      %p250 = pneg %p62
      %p251 = pneg %p59
      %p252 = pneg %p83
      %p253 = pneg %p80
      %p254 = pneg %p104
      %p255 = pneg %p101
      %p256 = pneg %p125
      %p257 = pneg %p122
      %p258 = pneg %p146
      %p259 = pneg %p143
      %p260 = pneg %p167
      %p261 = pneg %p164
      %p262 = pneg %p193
      %p263 = pneg %p190
      %p264 = scmp.lt.s32.totalorder %s20, 1
      %s265 = scalar_select %p264, %s20, 1
      %s266 = scalar_lea.vmem %s7, %s265
      %p267 = scmp.lt.s32.totalorder %s20, 1
      %s268 = scalar_select %p267, %s20, 1
      %s269 = smul.addr %s268, 8
      %s270 = scalar_lea.vmem %s0, %s269
      %p271 = scmp.lt.s32.totalorder %s20, 1
      %s272 = scalar_select %p271, %s20, 1
      %s273 = scalar_lea.vmem %s7, %s272
      %v274 = vld [vmem:[%s270] sm:$0xff]
      %v275 = vld [vmem:[%s1] sm:$0xff]
      %v276 = vld [vmem:[%s1 + $0x8] sm:$0xff]
      %s277 = scalar_lea.vmem %s1, 16
      %v278 = vld [vmem:[%s277] sm:$0xff]
      %v279 = vld [vmem:[%s277 + $0x8] sm:$0xff]
      %281 = vrot.lane.b32.xlu0 %v274, 127
      %v282 = vpop.permute.xlu0 %281
      %vm284 = vcmask 64512
      %v286 = vsel %vm284, %v278, 0
      %v289 = vsel %vm284, %v279, 0
      %291 = vmatprep.subr.mxu0 0.0
      %292 = vmatpush1.msra.mxu0 %v282
      %293 = vmatprep.subr.mxu0 0.0
      %294 = vmatpush1.msra.mxu0 0.0
      %295 = vmatprep.subr.mxu0 0.0
      %296 = vmatpush1.msra.mxu0 0.0
      %297 = vmatprep.subr.mxu0 0.0
      %298 = vmatpush1.msra.mxu0 0.0
      %299 = vmatprep.subr.mxu0 0.0
      %300 = vmatpush1.msra.mxu0 0.0
      %301 = vmatprep.subr.mxu0 0.0
      %302 = vmatpush1.msra.mxu0 0.0
      %303 = vmatprep.subr.mxu0 0.0
      %304 = vmatpush1.msra.mxu0 0.0
      %305 = vmatprep.subr.mxu0 0.0
      %306 = vmatpush1.msra.mxu0 0.0
      %307 = vmatprep.subr.mxu0 0.0
      %308 = vmatpush1.msra.mxu0 0.0
      %309 = vmatprep.subr.mxu0 0.0
      %310 = vmatpush1.msra.mxu0 0.0
      %311 = vmatprep.subr.mxu0 0.0
      %312 = vmatpush1.msra.mxu0 0.0
      %313 = vmatprep.subr.mxu0 0.0
      %314 = vmatpush1.msra.mxu0 0.0
      %315 = vmatprep.subr.mxu0 0.0
      %316 = vmatpush1.msra.mxu0 0.0
      %317 = vmatprep.subr.mxu0 0.0
      %318 = vmatpush1.msra.mxu0 0.0
      %319 = vmatprep.subr.mxu0 0.0
      %320 = vmatpush1.msra.mxu0 0.0
      %321 = vmatprep.subr.mxu0 0.0
      %322 = vmatpush1.msra.mxu0 0.0
      %323 = vmatprep.subr.mxu0 0.0
      %324 = vmatpush1.msra.mxu0 0.0
      %325 = vmatprep.subr.mxu0 0.0
      %326 = vmatpush1.msra.mxu0 0.0
      %327 = vmatprep.subr.mxu0 0.0
      %328 = vmatpush1.msra.mxu0 0.0
      %329 = vmatprep.subr.mxu0 0.0
      %330 = vmatpush1.msra.mxu0 0.0
      %331 = vmatprep.subr.mxu0 0.0
      %332 = vmatpush1.msra.mxu0 0.0
      %333 = vmatprep.subr.mxu0 0.0
      %334 = vmatpush1.msra.mxu0 0.0
      %335 = vmatprep.subr.mxu0 0.0
      %336 = vmatpush1.msra.mxu0 0.0
      %337 = vmatprep.subr.mxu0 0.0
      %338 = vmatpush1.msra.mxu0 0.0
      %339 = vmatprep.subr.mxu0 0.0
      %340 = vmatpush1.msra.mxu0 0.0
      %341 = vmatprep.subr.mxu0 0.0
      %342 = vmatpush1.msra.mxu0 0.0
      %343 = vmatprep.subr.mxu0 0.0
      %344 = vmatpush1.msra.mxu0 0.0
      %345 = vmatprep.subr.mxu0 0.0
      %346 = vmatpush1.msra.mxu0 0.0
      %347 = vmatprep.subr.mxu0 0.0
      %348 = vmatpush1.msra.mxu0 0.0
      %349 = vmatprep.subr.mxu0 0.0
      %350 = vmatpush1.msra.mxu0 0.0
      %351 = vmatprep.subr.mxu0 0.0
      %352 = vmatpush1.msra.mxu0 0.0
      %353 = vmatprep.subr.mxu0 0.0
      %354 = vmatpush1.msra.mxu0 0.0
      %355 = vmatprep.mubr.f32.mxu0 0.0
      %356 = vmatmul.mubr.f32.gmra.mrb[0].mxu0 %v286
      %v357 = vpop.f32.mrb[0].mxu0
      %v358 = vadd.f32 0.0, %v357
      %v359 = vpop.f32.mrb[0].mxu0
      %360 = vmatprep.mubr.f32.mxu0 0.0
      %361 = vmatmul.mubr.f32.gmra.mrb[0].mxu0 %v289
      %v362 = vpop.f32.mrb[0].mxu0
      %v363 = vadd.f32 0.0, %v362
      %v364 = vpop.f32.mrb[0].mxu0
      %365 = vdwg.mxu0
      %v367 = vsel %vm284, %v275, 0
      %v370 = vsel %vm284, %v276, 0
      %372 = vmatprep.subr.mxu0 0.0
      %373 = vmatpush1.msra.mxu0 %v274
      %374 = vmatprep.subr.mxu0 0.0
      %375 = vmatpush1.msra.mxu0 0.0
      %376 = vmatprep.subr.mxu0 0.0
      %377 = vmatpush1.msra.mxu0 0.0
      %378 = vmatprep.subr.mxu0 0.0
      %379 = vmatpush1.msra.mxu0 0.0
      %380 = vmatprep.subr.mxu0 0.0
      %381 = vmatpush1.msra.mxu0 0.0
      %382 = vmatprep.subr.mxu0 0.0
      %383 = vmatpush1.msra.mxu0 0.0
      %384 = vmatprep.subr.mxu0 0.0
      %385 = vmatpush1.msra.mxu0 0.0
      %386 = vmatprep.subr.mxu0 0.0
      %387 = vmatpush1.msra.mxu0 0.0
      %388 = vmatprep.subr.mxu0 0.0
      %389 = vmatpush1.msra.mxu0 0.0
      %390 = vmatprep.subr.mxu0 0.0
      %391 = vmatpush1.msra.mxu0 0.0
      %392 = vmatprep.subr.mxu0 0.0
      %393 = vmatpush1.msra.mxu0 0.0
      %394 = vmatprep.subr.mxu0 0.0
      %395 = vmatpush1.msra.mxu0 0.0
      %396 = vmatprep.subr.mxu0 0.0
      %397 = vmatpush1.msra.mxu0 0.0
      %398 = vmatprep.subr.mxu0 0.0
      %399 = vmatpush1.msra.mxu0 0.0
      %400 = vmatprep.subr.mxu0 0.0
      %401 = vmatpush1.msra.mxu0 0.0
      %402 = vmatprep.subr.mxu0 0.0
      %403 = vmatpush1.msra.mxu0 0.0
      %404 = vmatprep.subr.mxu0 0.0
      %405 = vmatpush1.msra.mxu0 0.0
      %406 = vmatprep.subr.mxu0 0.0
      %407 = vmatpush1.msra.mxu0 0.0
      %408 = vmatprep.subr.mxu0 0.0
      %409 = vmatpush1.msra.mxu0 0.0
      %410 = vmatprep.subr.mxu0 0.0
      %411 = vmatpush1.msra.mxu0 0.0
      %412 = vmatprep.subr.mxu0 0.0
      %413 = vmatpush1.msra.mxu0 0.0
      %414 = vmatprep.subr.mxu0 0.0
      %415 = vmatpush1.msra.mxu0 0.0
      %416 = vmatprep.subr.mxu0 0.0
      %417 = vmatpush1.msra.mxu0 0.0
      %418 = vmatprep.subr.mxu0 0.0
      %419 = vmatpush1.msra.mxu0 0.0
      %420 = vmatprep.subr.mxu0 0.0
      %421 = vmatpush1.msra.mxu0 0.0
      %422 = vmatprep.subr.mxu0 0.0
      %423 = vmatpush1.msra.mxu0 0.0
      %424 = vmatprep.subr.mxu0 0.0
      %425 = vmatpush1.msra.mxu0 0.0
      %426 = vmatprep.subr.mxu0 0.0
      %427 = vmatpush1.msra.mxu0 0.0
      %428 = vmatprep.subr.mxu0 0.0
      %429 = vmatpush1.msra.mxu0 0.0
      %430 = vmatprep.subr.mxu0 0.0
      %431 = vmatpush1.msra.mxu0 0.0
      %432 = vmatprep.subr.mxu0 0.0
      %433 = vmatpush1.msra.mxu0 0.0
      %434 = vmatprep.subr.mxu0 0.0
      %435 = vmatpush1.msra.mxu0 0.0
      %436 = vmatprep.mubr.f32.mxu0 0.0
      %437 = vmatmul.mubr.f32.gmra.mrb[0].mxu0 %v367
      %v438 = vpop.f32.mrb[0].mxu0
      %v439 = vadd.f32 %v358, %v438
      %v440 = vpop.f32.mrb[0].mxu0
      %441 = vmatprep.mubr.f32.mxu0 0.0
      %442 = vmatmul.mubr.f32.gmra.mrb[0].mxu0 %v370
      %v443 = vpop.f32.mrb[0].mxu0
      %v444 = vadd.f32 %v363, %v443
      %v445 = vpop.f32.mrb[0].mxu0
      %446 = vdwg.mxu0
      %s447 = scalar_lea.vmem %s1, 32
      %v448 = vld [vmem:[%s447] sm:$0xff]
      %v449 = vld [vmem:[%s447 + $0x8] sm:$0xff]
      %450 = vrot.lane.b32.xlu0 %v274, 126
      %v451 = vpop.permute.xlu0 %450
      %v454 = vsel %vm284, %v448, 0
      %v457 = vsel %vm284, %v449, 0
      %459 = vmatprep.subr.mxu0 0.0
      %460 = vmatpush1.msra.mxu0 %v451
      %461 = vmatprep.subr.mxu0 0.0
      %462 = vmatpush1.msra.mxu0 0.0
      %463 = vmatprep.subr.mxu0 0.0
      %464 = vmatpush1.msra.mxu0 0.0
      %465 = vmatprep.subr.mxu0 0.0
      %466 = vmatpush1.msra.mxu0 0.0
      %467 = vmatprep.subr.mxu0 0.0
      %468 = vmatpush1.msra.mxu0 0.0
      %469 = vmatprep.subr.mxu0 0.0
      %470 = vmatpush1.msra.mxu0 0.0
      %471 = vmatprep.subr.mxu0 0.0
      %472 = vmatpush1.msra.mxu0 0.0
      %473 = vmatprep.subr.mxu0 0.0
      %474 = vmatpush1.msra.mxu0 0.0
      %475 = vmatprep.subr.mxu0 0.0
      %476 = vmatpush1.msra.mxu0 0.0
      %477 = vmatprep.subr.mxu0 0.0
      %478 = vmatpush1.msra.mxu0 0.0
      %479 = vmatprep.subr.mxu0 0.0
      %480 = vmatpush1.msra.mxu0 0.0
      %481 = vmatprep.subr.mxu0 0.0
      %482 = vmatpush1.msra.mxu0 0.0
      %483 = vmatprep.subr.mxu0 0.0
      %484 = vmatpush1.msra.mxu0 0.0
      %485 = vmatprep.subr.mxu0 0.0
      %486 = vmatpush1.msra.mxu0 0.0
      %487 = vmatprep.subr.mxu0 0.0
      %488 = vmatpush1.msra.mxu0 0.0
      %489 = vmatprep.subr.mxu0 0.0
      %490 = vmatpush1.msra.mxu0 0.0
      %491 = vmatprep.subr.mxu0 0.0
      %492 = vmatpush1.msra.mxu0 0.0
      %493 = vmatprep.subr.mxu0 0.0
      %494 = vmatpush1.msra.mxu0 0.0
      %495 = vmatprep.subr.mxu0 0.0
      %496 = vmatpush1.msra.mxu0 0.0
      %497 = vmatprep.subr.mxu0 0.0
      %498 = vmatpush1.msra.mxu0 0.0
      %499 = vmatprep.subr.mxu0 0.0
      %500 = vmatpush1.msra.mxu0 0.0
      %501 = vmatprep.subr.mxu0 0.0
      %502 = vmatpush1.msra.mxu0 0.0
      %503 = vmatprep.subr.mxu0 0.0
      %504 = vmatpush1.msra.mxu0 0.0
      %505 = vmatprep.subr.mxu0 0.0
      %506 = vmatpush1.msra.mxu0 0.0
      %507 = vmatprep.subr.mxu0 0.0
      %508 = vmatpush1.msra.mxu0 0.0
      %509 = vmatprep.subr.mxu0 0.0
      %510 = vmatpush1.msra.mxu0 0.0
      %511 = vmatprep.subr.mxu0 0.0
      %512 = vmatpush1.msra.mxu0 0.0
      %513 = vmatprep.subr.mxu0 0.0
      %514 = vmatpush1.msra.mxu0 0.0
      %515 = vmatprep.subr.mxu0 0.0
      %516 = vmatpush1.msra.mxu0 0.0
      %517 = vmatprep.subr.mxu0 0.0
      %518 = vmatpush1.msra.mxu0 0.0
      %519 = vmatprep.subr.mxu0 0.0
      %520 = vmatpush1.msra.mxu0 0.0
      %521 = vmatprep.subr.mxu0 0.0
      %522 = vmatpush1.msra.mxu0 0.0
      %523 = vmatprep.mubr.f32.mxu0 0.0
      %524 = vmatmul.mubr.f32.gmra.mrb[0].mxu0 %v454
      %v525 = vpop.f32.mrb[0].mxu0
      %v526 = vadd.f32 0.0, %v525
      %v527 = vpop.f32.mrb[0].mxu0
      %528 = vmatprep.mubr.f32.mxu0 0.0
      %529 = vmatmul.mubr.f32.gmra.mrb[0].mxu0 %v457
      %v530 = vpop.f32.mrb[0].mxu0
      %v531 = vadd.f32 0.0, %v530
      %v532 = vpop.f32.mrb[0].mxu0
      %533 = vdwg.mxu0
      %v534 = vadd.f32 %v439, %v526
      %v535 = vadd.f32 %v444, %v531
      %v536 = vld [vmem:[%s2] sm:$0xff]
      %v537 = vld [vmem:[%s2 + $0x8] sm:$0xff]
      %539 = vset.pattern.permute.xlu0 0
      %540 = vperm.xlu0 %539, %v536
      %v541 = vpop.permute.xlu0 %540
      %544 = vset.pattern.permute.xlu0 0
      %545 = vperm.xlu0 %544, %v537
      %v546 = vpop.permute.xlu0 %545
      %v548 = vadd.f32 %v534, %v541
      %v549 = vadd.f32 %v535, %v546
      %v550 = vmax.f32 %v548, 0.0
      %v551 = vmax.f32 %v549, 0.0
      %vm552 = vcmask 113664
      %553 = vst.msk [vmem:[#allocation2] sm:$0xff] %vm552, %v550
      %554 = vst.msk [vmem:[#allocation2 + $0x8] sm:$0xff] %vm552, %v551
      %v555 = vld [vmem:[#allocation2] sm:$0xff]
      %v556 = vld [vmem:[#allocation2 + $0x8] sm:$0xff]
      %v557 = vld [vmem:[%s3] sm:$0xff]
      %s558 = scalar_lea.vmem %s3, 8
      %v559 = vld [vmem:[%s558] sm:$0xff]
      %562 = vrot.lane.b32.xlu0 %v555, 127
      %v563 = vpop.permute.xlu0 %562
      %564 = vrot.lane.b32.xlu0 %v556, 127
      %v565 = vpop.permute.xlu0 %564
      %vm568 = vcmask 130048
      %v570 = vsel %vm568, %v559, 0
      %572 = vmatprep.subr.mxu0 0.0
      %573 = vmatpush1.msra.mxu0 %v563
      %574 = vmatprep.subr.mxu0 0.0
      %575 = vmatpush1.msra.mxu0 %v565
      %576 = vmatprep.subr.mxu0 0.0
      %577 = vmatpush1.msra.mxu0 0.0
      %578 = vmatprep.subr.mxu0 0.0
      %579 = vmatpush1.msra.mxu0 0.0
      %580 = vmatprep.subr.mxu0 0.0
      %581 = vmatpush1.msra.mxu0 0.0
      %582 = vmatprep.subr.mxu0 0.0
      %583 = vmatpush1.msra.mxu0 0.0
      %584 = vmatprep.subr.mxu0 0.0
      %585 = vmatpush1.msra.mxu0 0.0
      %586 = vmatprep.subr.mxu0 0.0
      %587 = vmatpush1.msra.mxu0 0.0
      %588 = vmatprep.subr.mxu0 0.0
      %589 = vmatpush1.msra.mxu0 0.0
      %590 = vmatprep.subr.mxu0 0.0
      %591 = vmatpush1.msra.mxu0 0.0
      %592 = vmatprep.subr.mxu0 0.0
      %593 = vmatpush1.msra.mxu0 0.0
      %594 = vmatprep.subr.mxu0 0.0
      %595 = vmatpush1.msra.mxu0 0.0
      %596 = vmatprep.subr.mxu0 0.0
      %597 = vmatpush1.msra.mxu0 0.0
      %598 = vmatprep.subr.mxu0 0.0
      %599 = vmatpush1.msra.mxu0 0.0
      %600 = vmatprep.subr.mxu0 0.0
      %601 = vmatpush1.msra.mxu0 0.0
      %602 = vmatprep.subr.mxu0 0.0
      %603 = vmatpush1.msra.mxu0 0.0
      %604 = vmatprep.subr.mxu0 0.0
      %605 = vmatpush1.msra.mxu0 0.0
      %606 = vmatprep.subr.mxu0 0.0
      %607 = vmatpush1.msra.mxu0 0.0
      %608 = vmatprep.subr.mxu0 0.0
      %609 = vmatpush1.msra.mxu0 0.0
      %610 = vmatprep.subr.mxu0 0.0
      %611 = vmatpush1.msra.mxu0 0.0
      %612 = vmatprep.subr.mxu0 0.0
      %613 = vmatpush1.msra.mxu0 0.0
      %614 = vmatprep.subr.mxu0 0.0
      %615 = vmatpush1.msra.mxu0 0.0
      %616 = vmatprep.subr.mxu0 0.0
      %617 = vmatpush1.msra.mxu0 0.0
      %618 = vmatprep.subr.mxu0 0.0
      %619 = vmatpush1.msra.mxu0 0.0
      %620 = vmatprep.subr.mxu0 0.0
      %621 = vmatpush1.msra.mxu0 0.0
      %622 = vmatprep.subr.mxu0 0.0
      %623 = vmatpush1.msra.mxu0 0.0
      %624 = vmatprep.subr.mxu0 0.0
      %625 = vmatpush1.msra.mxu0 0.0
      %626 = vmatprep.subr.mxu0 0.0
      %627 = vmatpush1.msra.mxu0 0.0
      %628 = vmatprep.subr.mxu0 0.0
      %629 = vmatpush1.msra.mxu0 0.0
      %630 = vmatprep.subr.mxu0 0.0
      %631 = vmatpush1.msra.mxu0 0.0
      %632 = vmatprep.subr.mxu0 0.0
      %633 = vmatpush1.msra.mxu0 0.0
      %634 = vmatprep.subr.mxu0 0.0
      %635 = vmatpush1.msra.mxu0 0.0
      %636 = vmatprep.mubr.f32.mxu0 0.0
      %637 = vmatmul.mubr.f32.gmra.mrb[0].mxu0 %v570
      %v638 = vpop.f32.mrb[0].mxu0
      %v639 = vadd.f32 0.0, %v638
      %v640 = vpop.f32.mrb[0].mxu0
      %641 = vdwg.mxu0
      %v643 = vsel %vm568, %v557, 0
      %645 = vmatprep.subr.mxu0 0.0
      %646 = vmatpush1.msra.mxu0 %v555
      %647 = vmatprep.subr.mxu0 0.0
      %648 = vmatpush1.msra.mxu0 %v556
      %649 = vmatprep.subr.mxu0 0.0
      %650 = vmatpush1.msra.mxu0 0.0
      %651 = vmatprep.subr.mxu0 0.0
      %652 = vmatpush1.msra.mxu0 0.0
      %653 = vmatprep.subr.mxu0 0.0
      %654 = vmatpush1.msra.mxu0 0.0
      %655 = vmatprep.subr.mxu0 0.0
      %656 = vmatpush1.msra.mxu0 0.0
      %657 = vmatprep.subr.mxu0 0.0
      %658 = vmatpush1.msra.mxu0 0.0
      %659 = vmatprep.subr.mxu0 0.0
      %660 = vmatpush1.msra.mxu0 0.0
      %661 = vmatprep.subr.mxu0 0.0
      %662 = vmatpush1.msra.mxu0 0.0
      %663 = vmatprep.subr.mxu0 0.0
      %664 = vmatpush1.msra.mxu0 0.0
      %665 = vmatprep.subr.mxu0 0.0
      %666 = vmatpush1.msra.mxu0 0.0
      %667 = vmatprep.subr.mxu0 0.0
      %668 = vmatpush1.msra.mxu0 0.0
      %669 = vmatprep.subr.mxu0 0.0
      %670 = vmatpush1.msra.mxu0 0.0
      %671 = vmatprep.subr.mxu0 0.0
      %672 = vmatpush1.msra.mxu0 0.0
      %673 = vmatprep.subr.mxu0 0.0
      %674 = vmatpush1.msra.mxu0 0.0
      %675 = vmatprep.subr.mxu0 0.0
      %676 = vmatpush1.msra.mxu0 0.0
      %677 = vmatprep.subr.mxu0 0.0
      %678 = vmatpush1.msra.mxu0 0.0
      %679 = vmatprep.subr.mxu0 0.0
      %680 = vmatpush1.msra.mxu0 0.0
      %681 = vmatprep.subr.mxu0 0.0
      %682 = vmatpush1.msra.mxu0 0.0
      %683 = vmatprep.subr.mxu0 0.0
      %684 = vmatpush1.msra.mxu0 0.0
      %685 = vmatprep.subr.mxu0 0.0
      %686 = vmatpush1.msra.mxu0 0.0
      %687 = vmatprep.subr.mxu0 0.0
      %688 = vmatpush1.msra.mxu0 0.0
      %689 = vmatprep.subr.mxu0 0.0
      %690 = vmatpush1.msra.mxu0 0.0
      %691 = vmatprep.subr.mxu0 0.0
      %692 = vmatpush1.msra.mxu0 0.0
      %693 = vmatprep.subr.mxu0 0.0
      %694 = vmatpush1.msra.mxu0 0.0
      %695 = vmatprep.subr.mxu0 0.0
      %696 = vmatpush1.msra.mxu0 0.0
      %697 = vmatprep.subr.mxu0 0.0
      %698 = vmatpush1.msra.mxu0 0.0
      %699 = vmatprep.subr.mxu0 0.0
      %700 = vmatpush1.msra.mxu0 0.0
      %701 = vmatprep.subr.mxu0 0.0
      %702 = vmatpush1.msra.mxu0 0.0
      %703 = vmatprep.subr.mxu0 0.0
      %704 = vmatpush1.msra.mxu0 0.0
      %705 = vmatprep.subr.mxu0 0.0
      %706 = vmatpush1.msra.mxu0 0.0
      %707 = vmatprep.subr.mxu0 0.0
      %708 = vmatpush1.msra.mxu0 0.0
      %709 = vmatprep.mubr.f32.mxu0 0.0
      %710 = vmatmul.mubr.f32.gmra.mrb[0].mxu0 %v643
      %v711 = vpop.f32.mrb[0].mxu0
      %v712 = vadd.f32 %v639, %v711
      %v713 = vpop.f32.mrb[0].mxu0
      %714 = vdwg.mxu0
      %s715 = scalar_lea.vmem %s3, 16
      %v716 = vld [vmem:[%s715] sm:$0xff]
      %717 = vrot.lane.b32.xlu0 %v555, 126
      %v718 = vpop.permute.xlu0 %717
      %719 = vrot.lane.b32.xlu0 %v556, 126
      %v720 = vpop.permute.xlu0 %719
      %v724 = vsel %vm568, %v716, 0
      %726 = vmatprep.subr.mxu0 0.0
      %727 = vmatpush1.msra.mxu0 %v718
      %728 = vmatprep.subr.mxu0 0.0
      %729 = vmatpush1.msra.mxu0 %v720
      %730 = vmatprep.subr.mxu0 0.0
      %731 = vmatpush1.msra.mxu0 0.0
      %732 = vmatprep.subr.mxu0 0.0
      %733 = vmatpush1.msra.mxu0 0.0
      %734 = vmatprep.subr.mxu0 0.0
      %735 = vmatpush1.msra.mxu0 0.0
      %736 = vmatprep.subr.mxu0 0.0
      %737 = vmatpush1.msra.mxu0 0.0
      %738 = vmatprep.subr.mxu0 0.0
      %739 = vmatpush1.msra.mxu0 0.0
      %740 = vmatprep.subr.mxu0 0.0
      %741 = vmatpush1.msra.mxu0 0.0
      %742 = vmatprep.subr.mxu0 0.0
      %743 = vmatpush1.msra.mxu0 0.0
      %744 = vmatprep.subr.mxu0 0.0
      %745 = vmatpush1.msra.mxu0 0.0
      %746 = vmatprep.subr.mxu0 0.0
      %747 = vmatpush1.msra.mxu0 0.0
      %748 = vmatprep.subr.mxu0 0.0
      %749 = vmatpush1.msra.mxu0 0.0
      %750 = vmatprep.subr.mxu0 0.0
      %751 = vmatpush1.msra.mxu0 0.0
      %752 = vmatprep.subr.mxu0 0.0
      %753 = vmatpush1.msra.mxu0 0.0
      %754 = vmatprep.subr.mxu0 0.0
      %755 = vmatpush1.msra.mxu0 0.0
      %756 = vmatprep.subr.mxu0 0.0
      %757 = vmatpush1.msra.mxu0 0.0
      %758 = vmatprep.subr.mxu0 0.0
      %759 = vmatpush1.msra.mxu0 0.0
      %760 = vmatprep.subr.mxu0 0.0
      %761 = vmatpush1.msra.mxu0 0.0
      %762 = vmatprep.subr.mxu0 0.0
      %763 = vmatpush1.msra.mxu0 0.0
      %764 = vmatprep.subr.mxu0 0.0
      %765 = vmatpush1.msra.mxu0 0.0
      %766 = vmatprep.subr.mxu0 0.0
      %767 = vmatpush1.msra.mxu0 0.0
      %768 = vmatprep.subr.mxu0 0.0
      %769 = vmatpush1.msra.mxu0 0.0
      %770 = vmatprep.subr.mxu0 0.0
      %771 = vmatpush1.msra.mxu0 0.0
      %772 = vmatprep.subr.mxu0 0.0
      %773 = vmatpush1.msra.mxu0 0.0
      %774 = vmatprep.subr.mxu0 0.0
      %775 = vmatpush1.msra.mxu0 0.0
      %776 = vmatprep.subr.mxu0 0.0
      %777 = vmatpush1.msra.mxu0 0.0
      %778 = vmatprep.subr.mxu0 0.0
      %779 = vmatpush1.msra.mxu0 0.0
      %780 = vmatprep.subr.mxu0 0.0
      %781 = vmatpush1.msra.mxu0 0.0
      %782 = vmatprep.subr.mxu0 0.0
      %783 = vmatpush1.msra.mxu0 0.0
      %784 = vmatprep.subr.mxu0 0.0
      %785 = vmatpush1.msra.mxu0 0.0
      %786 = vmatprep.subr.mxu0 0.0
      %787 = vmatpush1.msra.mxu0 0.0
      %788 = vmatprep.subr.mxu0 0.0
      %789 = vmatpush1.msra.mxu0 0.0
      %790 = vmatprep.mubr.f32.mxu0 0.0
      %791 = vmatmul.mubr.f32.gmra.mrb[0].mxu0 %v724
      %v792 = vpop.f32.mrb[0].mxu0
      %v793 = vadd.f32 0.0, %v792
      %v794 = vpop.f32.mrb[0].mxu0
      %795 = vdwg.mxu0
      %v796 = vadd.f32 %v712, %v793
      %v797 = vld [vmem:[%s4] sm:$0xff]
      %799 = vset.pattern.permute.xlu0 0
      %800 = vperm.xlu0 %799, %v797
      %v801 = vpop.permute.xlu0 %800
      %v803 = vadd.f32 %v796, %v801
      %v804 = vld [vmem:[%s5] sm:$0xff]
      %v805 = vmul.f32 %v803, %v804
      %vm806 = vcmask 97280
      %v807 = vsel %vm806, %v805, 0.0
      %808 = vadd.xlane.f32.xlu0 %v807
      %v809 = vpop.xlane.xlu0 %808
      %v810 = vrot.slane %v809, 4
      %v811 = vadd.f32 %v809, %v810
      %v812 = vrot.slane %v811, 2
      %v813 = vadd.f32 %v811, %v812
      %v814 = vrot.slane %v813, 1
      %v815 = vadd.f32 %v813, %v814
      %v816 = vld [vmem:[#allocation3] sm:$0x1]
      %v817 = vadd.f32 %v815, %v816
      %vm818 = vcmask 0
      %819 = vst.msk [vmem:[%s273] sm:$0x1] %vm818, %v817
      %p820 = scmp.lt.s32.totalorder %s20, 1
      %s821 = scalar_select %p820, %s20, 1
      %s822 = scalar_lea.vmem %s7, %s821
      // Predicated region
      $region49: #{tpu_custom_call.1} parent=47 // pred_check
        %p823 = pneg %p190
      $region50: #{tpu_custom_call.1} parent=47 // pred_check_branch
        %825 = sbr.rel (%p823) target = $region52
      $region51: #{tpu_custom_call.1} parent=47 // pred_region
        _
      $region52: #{tpu_custom_call.1} parent=47 // pred_fallthru
        _
    $region48: #{tpu_custom_call.1} parent=5 // pred_fallthru
      _
    %p826 = scmp.le.s32.totalorder 2, %s15
    // Predicated region
    $region53: #{tpu_custom_call.1} parent=5 // pred_check
      %p827 = pneg %p826
    $region54: #{tpu_custom_call.1} parent=5 // pred_check_branch
      %829 = sbr.rel (%p827) target = $region56
    $region55: #{tpu_custom_call.1} parent=5 // pred_region
      %s830 = ssub.s32 %s15, 2
      // Predicated region
      $region57: #{tpu_custom_call.1} parent=55 // pred_check
        %p831 = pneg %p196
      $region58: #{tpu_custom_call.1} parent=55 // pred_check_branch
        %833 = sbr.rel (%p831) target = $region60
      $region59: #{tpu_custom_call.1} parent=55 // pred_region
        %p834 = scmp.lt.s32.totalorder %s21, 1
        %s835 = scalar_select %p834, %s21, 1
        %s836 = scalar_lea.vmem %s7, %s835
      $region60: #{tpu_custom_call.1} parent=55 // pred_fallthru
        _
    $region56: #{tpu_custom_call.1} parent=5 // pred_fallthru
      _
  $region6: #{tpu_custom_call.1} parent=0 // loop_footer
    %s19 = sadd.s32 1, %s15
  $region7: #{tpu_custom_call.1} parent=0 // loop_footer_branch
    %14 = sbr.rel target = $region3
  $region8: #{tpu_custom_call.1} parent=0 // loop_exit
    _

</llo_original>
